<compile_context>
chip_gen: v6e
topology: v6e:2x2x1
jax: 0.10.0
libtpu: 0.0.40
codegen_flags: <defaults>
</compile_context>

<pallas_src>
import functools

import jax
import jax.numpy as jnp
from jax.experimental import pallas as pl
from jax.experimental.pallas import tpu as pltpu


def _apply_acti(x, acti):
    if acti == "tanh":
        return jnp.tanh(x)
    if acti == "ReLU":
        return jnp.maximum(x, 0.0)
    if acti == "Sigmoid":
        return jax.nn.sigmoid(x)
    raise ValueError(f"unsupported activation: {acti}")


def decoder_kernel(x_ref, s_ref, enc_ref,
                   attn_ws_ref, attn_we_ref, attn_v_ref,
                   wih_ref, bih_ref, whh_ref, bhh_ref,
                   wfc_ref, bfc_ref,
                   out_ref, *, acti):
    B, E = x_ref.shape
    H = s_ref.shape[1]
    _, L, D2 = enc_ref.shape

    x = x_ref[...]                                   # [B, E]
    s = s_ref[...]                                   # [B, H]
    enc = enc_ref[...]                               # [B, L, D2]

    # ---- attention: a = softmax_L( v . tanh(W_s s + W_e enc) ) ------------
    e_s = jnp.dot(s, attn_ws_ref[...],
                  preferred_element_type=jnp.float32)                  # [B, H]
    e_e = jnp.dot(enc.reshape(B * L, D2), attn_we_ref[...],
                  preferred_element_type=jnp.float32)                  # [B*L, H]
    energy = jnp.tanh(e_e.reshape(B, L, H) + e_s[:, None, :])          # [B, L, H]
    # v-projection as VPU mul + lane reduce (attn_v is a [1, H] row).
    scores = jnp.sum(energy * attn_v_ref[...], axis=-1)                # [B, L]
    m = jnp.max(scores, axis=-1, keepdims=True)
    ex = jnp.exp(scores - m)
    a = ex / jnp.sum(ex, axis=-1, keepdims=True)                       # [B, L]
    # context: broadcast-multiply + sublane reduce over L.
    c = jnp.sum(a[:, :, None] * enc, axis=1)                           # [B, D2]

    # ---- single-step GRU (PyTorch gate order: r, z, n) ---------------------
    xc = jnp.concatenate([x, c], axis=-1)                              # [B, E+D2]
    gx = jnp.dot(xc, wih_ref[...],
                 preferred_element_type=jnp.float32) + bih_ref[...]    # [B, 3H]
    gh = jnp.dot(s, whh_ref[...],
                 preferred_element_type=jnp.float32) + bhh_ref[...]    # [B, 3H]
    r = jax.nn.sigmoid(gx[:, 0:H] + gh[:, 0:H])
    z = jax.nn.sigmoid(gx[:, H:2 * H] + gh[:, H:2 * H])
    n = jnp.tanh(gx[:, 2 * H:3 * H] + r * gh[:, 2 * H:3 * H])
    h_new = (1.0 - z) * n + z * s                                      # [B, H]

    # ---- pred = acti( fc_out( [dec_output | c | embedded] ) ) --------------
    hcx = jnp.concatenate([h_new, c, x], axis=-1)                      # [B, H+D2+E]
    pred = _apply_acti(jnp.dot(hcx, wfc_ref[...],
                               preferred_element_type=jnp.float32)
                       + bfc_ref[...], acti)                           # [B, E]

    # Single lane-dense whole-tile store: [pred | hidden].
    out_ref[...] = jnp.concatenate([pred, h_new], axis=-1)             # [B, E+H]


def pack_decoder_params(params):
    """One-time weight packing (do NOT redo per decoding step)."""
    return {
        "attn_ws": params["attn_ws"],                                   # [H, H]
        "attn_we": params["attn_we"],                                   # [D2, H]
        "attn_v_row": params["attn_v"].reshape(1, -1),                  # [1, H]
        "wih": jnp.concatenate([params["wih_x"], params["wih_c"]], 0),  # [E+D2, 3H]
        "bih": params["bih"],                                           # [1, 3H]
        "whh": params["whh"],                                           # [H, 3H]
        "bhh": params["bhh"],                                           # [1, 3H]
        "wfc": jnp.concatenate([params["wfc_h"], params["wfc_c"],
                                params["wfc_x"]], 0),                   # [H+D2+E, E]
        "bfc": params["bfc"],                                           # [1, E]
    }


@functools.partial(jax.jit, static_argnames=("acti",))
def decoder_forward(dec_input, s, enc_output, packed, acti="tanh"):
    """dec_input [B,E], s [B,H], enc_output [L,B,2*enc_hid] (PyTorch layout)."""
    B, E = dec_input.shape
    H = s.shape[1]

    # Layout plumbing outside the kernel (tiny; fused by XLA under jit).
    enc_bld = jnp.transpose(enc_output, (1, 0, 2))                      # [B, L, D2]

    args = (dec_input, s, enc_bld,
            packed["attn_ws"], packed["attn_we"], packed["attn_v_row"],
            packed["wih"], packed["bih"], packed["whh"], packed["bhh"],
            packed["wfc"], packed["bfc"])

    vmem = pl.BlockSpec(memory_space=pltpu.MemorySpace.VMEM)
    out = pl.pallas_call(
        functools.partial(decoder_kernel, acti=acti),
        out_shape=jax.ShapeDtypeStruct((B, E + H), jnp.float32),
        in_specs=[vmem] * len(args),
        out_specs=vmem,
    )(*args)
    return out[:, :E], out[:, E:]


def decoder_reference(dec_input, s, enc_output, params, acti="tanh"):
    """Pure-JAX reference matching the PyTorch forward semantics."""
    H = s.shape[1]
    enc = jnp.transpose(enc_output, (1, 0, 2))                      # [B, L, D2]
    energy = jnp.tanh(s[:, None, :] @ params["attn_ws"] + enc @ params["attn_we"])
    scores = (energy @ params["attn_v"])[..., 0]                    # [B, L]
    a = jax.nn.softmax(scores, axis=1)
    c = jnp.einsum("bl,bld->bd", a, enc)                            # [B, D2]
    gx = dec_input @ params["wih_x"] + c @ params["wih_c"] + params["bih"]
    gh = s @ params["whh"] + params["bhh"]
    r = jax.nn.sigmoid(gx[:, :H] + gh[:, :H])
    z = jax.nn.sigmoid(gx[:, H:2 * H] + gh[:, H:2 * H])
    n = jnp.tanh(gx[:, 2 * H:] + r * gh[:, 2 * H:])
    h_new = (1.0 - z) * n + z * s
    lin = h_new @ params["wfc_h"] + c @ params["wfc_c"] + dec_input @ params["wfc_x"] + params["bfc"]
    pred = _apply_acti(lin, acti)
    return pred, h_new


if __name__ == "__main__":
    # Small, deterministic synthetic configuration.
    B, L = 2, 8                      # batch, src_len (L multiple of 8 -> free reshape)
    emb_dim = 8
    enc_hid_dim = 16                 # encoder is bidirectional -> features = 32
    dec_hid_dim = 32
    D2 = 2 * enc_hid_dim

    key = jax.random.PRNGKey(0)
    ks = jax.random.split(key, 16)

    def init(k, shape, scale=0.1):
        return scale * jax.random.normal(k, shape, dtype=jnp.float32)

    params = {
        # attention: Linear(D2 + H -> H, no bias) split into s / enc parts, plus v: H -> 1
        "attn_ws": init(ks[0], (dec_hid_dim, dec_hid_dim)),
        "attn_we": init(ks[1], (D2, dec_hid_dim)),
        "attn_v":  init(ks[2], (dec_hid_dim, 1)),
        # GRU(input = emb + D2, hidden = H); weight_ih split into x / c parts, gate order r,z,n
        "wih_x": init(ks[3], (emb_dim, 3 * dec_hid_dim)),
        "wih_c": init(ks[4], (D2, 3 * dec_hid_dim)),
        "bih":   init(ks[5], (1, 3 * dec_hid_dim)),
        "whh":   init(ks[6], (dec_hid_dim, 3 * dec_hid_dim)),
        "bhh":   init(ks[7], (1, 3 * dec_hid_dim)),
        # fc_out: Linear(D2 + H + emb -> emb) split into h / c / x parts
        "wfc_h": init(ks[8], (dec_hid_dim, emb_dim)),
        "wfc_c": init(ks[9], (D2, emb_dim)),
        "wfc_x": init(ks[10], (emb_dim, emb_dim)),
        "bfc":   init(ks[11], (1, emb_dim)),
    }

    dec_input = jax.random.normal(ks[12], (B, emb_dim), dtype=jnp.float32)
    s0 = jax.random.normal(ks[13], (B, dec_hid_dim), dtype=jnp.float32)
    enc_output = jax.random.normal(ks[14], (L, B, D2), dtype=jnp.float32)

    packed = pack_decoder_params(params)
    pred, hidden = decoder_forward(dec_input, s0, enc_output, packed, acti="tanh")
    pred, hidden = jax.block_until_ready((pred, hidden))

    pred_ref, hidden_ref = decoder_reference(dec_input, s0, enc_output, params, acti="tanh")
    assert pred.shape == (B, emb_dim) and hidden.shape == (B, dec_hid_dim)
    assert jnp.allclose(pred, pred_ref, atol=1e-4, rtol=1e-4)
    assert jnp.allclose(hidden, hidden_ref, atol=1e-4, rtol=1e-4)

    print("KERNEL_OK")
</pallas_src>

<mosaic_0001>
module attributes {stable_mosaic.version = 11 : i64} {
  func.func @decoder_kernel(%arg0: memref<2x8xf32, #tpu.memory_space<vmem>>, %arg1: memref<2x32xf32, #tpu.memory_space<vmem>>, %arg2: memref<2x8x32xf32, #tpu.memory_space<vmem>>, %arg3: memref<32x32xf32, #tpu.memory_space<vmem>>, %arg4: memref<32x32xf32, #tpu.memory_space<vmem>>, %arg5: memref<1x32xf32, #tpu.memory_space<vmem>>, %arg6: memref<40x96xf32, #tpu.memory_space<vmem>>, %arg7: memref<1x96xf32, #tpu.memory_space<vmem>>, %arg8: memref<32x96xf32, #tpu.memory_space<vmem>>, %arg9: memref<1x96xf32, #tpu.memory_space<vmem>>, %arg10: memref<72x8xf32, #tpu.memory_space<vmem>>, %arg11: memref<1x8xf32, #tpu.memory_space<vmem>>, %arg12: memref<2x40xf32, #tpu.memory_space<vmem>>) attributes {dimension_semantics = [], scalar_prefetch = 0 : i64, scratch_operands = 0 : i64, tpu.core_type = #tpu.core_type<tc>} {
    %c0 = arith.constant 0 : index
    %c0_0 = arith.constant 0 : index
    %0 = vector.load %arg0[%c0, %c0_0] : memref<2x8xf32, #tpu.memory_space<vmem>>, vector<2x8xf32>
    %c0_1 = arith.constant 0 : index
    %c0_2 = arith.constant 0 : index
    %1 = vector.load %arg1[%c0_1, %c0_2] : memref<2x32xf32, #tpu.memory_space<vmem>>, vector<2x32xf32>
    %c0_3 = arith.constant 0 : index
    %c0_4 = arith.constant 0 : index
    %c0_5 = arith.constant 0 : index
    %2 = vector.load %arg2[%c0_3, %c0_4, %c0_5] : memref<2x8x32xf32, #tpu.memory_space<vmem>>, vector<2x8x32xf32>
    %c0_6 = arith.constant 0 : index
    %c0_7 = arith.constant 0 : index
    %3 = vector.load %arg3[%c0_6, %c0_7] : memref<32x32xf32, #tpu.memory_space<vmem>>, vector<32x32xf32>
    %cst = arith.constant dense<0.000000e+00> : vector<2x32xf32>
    %4 = tpu.matmul %1, %3, %cst {dimension_numbers = #tpu.dot_dimension_numbers<[1], [0], [0], [1], [0, 0, 1, 1], [], []>} : vector<2x32xf32>, vector<32x32xf32>, vector<2x32xf32> -> vector<2x32xf32>
    %5 = vector.shape_cast %2 : vector<2x8x32xf32> to vector<16x32xf32>
    %c0_8 = arith.constant 0 : index
    %c0_9 = arith.constant 0 : index
    %6 = vector.load %arg4[%c0_8, %c0_9] : memref<32x32xf32, #tpu.memory_space<vmem>>, vector<32x32xf32>
    %cst_10 = arith.constant dense<0.000000e+00> : vector<16x32xf32>
    %7 = tpu.matmul %5, %6, %cst_10 {dimension_numbers = #tpu.dot_dimension_numbers<[1], [0], [0], [1], [0, 0, 1, 1], [], []>} : vector<16x32xf32>, vector<32x32xf32>, vector<16x32xf32> -> vector<16x32xf32>
    %8 = vector.shape_cast %7 : vector<16x32xf32> to vector<2x8x32xf32>
    %9 = vector.shape_cast %4 : vector<2x32xf32> to vector<2x1x32xf32>
    %10 = vector.broadcast %9 : vector<2x1x32xf32> to vector<2x8x32xf32>
    %11 = arith.addf %8, %10 : vector<2x8x32xf32>
    %12 = math.tanh %11 : vector<2x8x32xf32>
    %c0_11 = arith.constant 0 : index
    %c0_12 = arith.constant 0 : index
    %13 = vector.load %arg5[%c0_11, %c0_12] : memref<1x32xf32, #tpu.memory_space<vmem>>, vector<1x32xf32>
    %14 = vector.shape_cast %13 : vector<1x32xf32> to vector<1x1x32xf32>
    %15 = vector.broadcast %14 : vector<1x1x32xf32> to vector<2x8x32xf32>
    %16 = arith.mulf %12, %15 : vector<2x8x32xf32>
    %cst_13 = arith.constant dense<0.000000e+00> : vector<2x8xf32>
    %17 = vector.multi_reduction <add>, %16, %cst_13 [2] : vector<2x8x32xf32> to vector<2x8xf32>
    %cst_14 = arith.constant dense<0xFF800000> : vector<2xf32>
    %18 = vector.multi_reduction <maximumf>, %17, %cst_14 [1] : vector<2x8xf32> to vector<2xf32>
    %19 = vector.shape_cast %18 : vector<2xf32> to vector<2x1xf32>
    %20 = vector.broadcast %19 : vector<2x1xf32> to vector<2x8xf32>
    %21 = arith.subf %17, %20 : vector<2x8xf32>
    %22 = math.exp %21 : vector<2x8xf32>
    %cst_15 = arith.constant dense<0.000000e+00> : vector<2xf32>
    %23 = vector.multi_reduction <add>, %22, %cst_15 [1] : vector<2x8xf32> to vector<2xf32>
    %24 = vector.shape_cast %23 : vector<2xf32> to vector<2x1xf32>
    %25 = vector.broadcast %24 : vector<2x1xf32> to vector<2x8xf32>
    %26 = arith.divf %22, %25 : vector<2x8xf32>
    %27 = vector.shape_cast %26 : vector<2x8xf32> to vector<2x8x1xf32>
    %28 = vector.broadcast %27 : vector<2x8x1xf32> to vector<2x8x32xf32>
    %29 = arith.mulf %28, %2 : vector<2x8x32xf32>
    %cst_16 = arith.constant dense<0.000000e+00> : vector<2x32xf32>
    %30 = vector.multi_reduction <add>, %29, %cst_16 [1] : vector<2x8x32xf32> to vector<2x32xf32>
    %31 = tpu.concatenate %0, %30 in 1 : vector<2x8xf32>, vector<2x32xf32> -> vector<2x40xf32>
    %c0_17 = arith.constant 0 : index
    %c0_18 = arith.constant 0 : index
    %32 = vector.load %arg6[%c0_17, %c0_18] : memref<40x96xf32, #tpu.memory_space<vmem>>, vector<40x96xf32>
    %cst_19 = arith.constant dense<0.000000e+00> : vector<2x96xf32>
    %33 = tpu.matmul %31, %32, %cst_19 {dimension_numbers = #tpu.dot_dimension_numbers<[1], [0], [0], [1], [0, 0, 1, 1], [], []>} : vector<2x40xf32>, vector<40x96xf32>, vector<2x96xf32> -> vector<2x96xf32>
    %c0_20 = arith.constant 0 : index
    %c0_21 = arith.constant 0 : index
    %34 = vector.load %arg7[%c0_20, %c0_21] : memref<1x96xf32, #tpu.memory_space<vmem>>, vector<1x96xf32>
    %35 = vector.broadcast %34 : vector<1x96xf32> to vector<2x96xf32>
    %36 = arith.addf %33, %35 : vector<2x96xf32>
    %c0_22 = arith.constant 0 : index
    %c0_23 = arith.constant 0 : index
    %37 = vector.load %arg8[%c0_22, %c0_23] : memref<32x96xf32, #tpu.memory_space<vmem>>, vector<32x96xf32>
    %cst_24 = arith.constant dense<0.000000e+00> : vector<2x96xf32>
    %38 = tpu.matmul %1, %37, %cst_24 {dimension_numbers = #tpu.dot_dimension_numbers<[1], [0], [0], [1], [0, 0, 1, 1], [], []>} : vector<2x32xf32>, vector<32x96xf32>, vector<2x96xf32> -> vector<2x96xf32>
    %c0_25 = arith.constant 0 : index
    %c0_26 = arith.constant 0 : index
    %39 = vector.load %arg9[%c0_25, %c0_26] : memref<1x96xf32, #tpu.memory_space<vmem>>, vector<1x96xf32>
    %40 = vector.broadcast %39 : vector<1x96xf32> to vector<2x96xf32>
    %41 = arith.addf %38, %40 : vector<2x96xf32>
    %42 = vector.extract_strided_slice %36 {offsets = [0, 0], sizes = [2, 32], strides = [1, 1]} : vector<2x96xf32> to vector<2x32xf32>
    %43 = vector.extract_strided_slice %41 {offsets = [0, 0], sizes = [2, 32], strides = [1, 1]} : vector<2x96xf32> to vector<2x32xf32>
    %44 = arith.addf %42, %43 : vector<2x32xf32>
    %45 = arith.negf %44 : vector<2x32xf32>
    %46 = math.exp %45 : vector<2x32xf32>
    %cst_27 = arith.constant 1.000000e+00 : f32
    %47 = vector.broadcast %cst_27 : f32 to vector<2x32xf32>
    %48 = arith.addf %47, %46 : vector<2x32xf32>
    %49 = arith.divf %47, %48 : vector<2x32xf32>
    %50 = vector.extract_strided_slice %36 {offsets = [0, 32], sizes = [2, 32], strides = [1, 1]} : vector<2x96xf32> to vector<2x32xf32>
    %51 = vector.extract_strided_slice %41 {offsets = [0, 32], sizes = [2, 32], strides = [1, 1]} : vector<2x96xf32> to vector<2x32xf32>
    %52 = arith.addf %50, %51 : vector<2x32xf32>
    %53 = arith.negf %52 : vector<2x32xf32>
    %54 = math.exp %53 : vector<2x32xf32>
    %cst_28 = arith.constant 1.000000e+00 : f32
    %55 = vector.broadcast %cst_28 : f32 to vector<2x32xf32>
    %56 = arith.addf %55, %54 : vector<2x32xf32>
    %57 = arith.divf %55, %56 : vector<2x32xf32>
    %58 = vector.extract_strided_slice %36 {offsets = [0, 64], sizes = [2, 32], strides = [1, 1]} : vector<2x96xf32> to vector<2x32xf32>
    %59 = vector.extract_strided_slice %41 {offsets = [0, 64], sizes = [2, 32], strides = [1, 1]} : vector<2x96xf32> to vector<2x32xf32>
    %60 = arith.mulf %49, %59 : vector<2x32xf32>
    %61 = arith.addf %58, %60 : vector<2x32xf32>
    %62 = math.tanh %61 : vector<2x32xf32>
    %cst_29 = arith.constant 1.000000e+00 : f32
    %63 = vector.broadcast %cst_29 : f32 to vector<2x32xf32>
    %64 = arith.subf %63, %57 : vector<2x32xf32>
    %65 = arith.mulf %64, %62 : vector<2x32xf32>
    %66 = arith.mulf %57, %1 : vector<2x32xf32>
    %67 = arith.addf %65, %66 : vector<2x32xf32>
    %68 = tpu.concatenate %67, %30, %0 in 1 : vector<2x32xf32>, vector<2x32xf32>, vector<2x8xf32> -> vector<2x72xf32>
    %c0_30 = arith.constant 0 : index
    %c0_31 = arith.constant 0 : index
    %69 = vector.load %arg10[%c0_30, %c0_31] : memref<72x8xf32, #tpu.memory_space<vmem>>, vector<72x8xf32>
    %cst_32 = arith.constant dense<0.000000e+00> : vector<2x8xf32>
    %70 = tpu.matmul %68, %69, %cst_32 {dimension_numbers = #tpu.dot_dimension_numbers<[1], [0], [0], [1], [0, 0, 1, 1], [], []>} : vector<2x72xf32>, vector<72x8xf32>, vector<2x8xf32> -> vector<2x8xf32>
    %c0_33 = arith.constant 0 : index
    %c0_34 = arith.constant 0 : index
    %71 = vector.load %arg11[%c0_33, %c0_34] : memref<1x8xf32, #tpu.memory_space<vmem>>, vector<1x8xf32>
    %72 = vector.broadcast %71 : vector<1x8xf32> to vector<2x8xf32>
    %73 = arith.addf %70, %72 : vector<2x8xf32>
    %74 = math.tanh %73 : vector<2x8xf32>
    %75 = tpu.concatenate %74, %67 in 1 : vector<2x8xf32>, vector<2x32xf32> -> vector<2x40xf32>
    %c0_35 = arith.constant 0 : index
    %c0_36 = arith.constant 0 : index
    %76 = vector.load %arg12[%c0_35, %c0_36] : memref<2x40xf32, #tpu.memory_space<vmem>>, vector<2x40xf32>
    tpu.vector_store %arg12[%c0_35, %c0_36], %75 {strides = array<i32>} : memref<2x40xf32, #tpu.memory_space<vmem>>, vector<2x40xf32>,
    return
  }
}

</mosaic_0001>

<llo_original>
// kernel: decoder_forward.1
$region0: #{decoder_forward.1}
  #allocation0 [shape = 'u32[]', space=smem, size = 0x4, offset = 0x4, fixed_abs, tag = 'smem constant byte address 0x4 - core index']
  #allocation1 [shape = 'u32[144,128]{1,0:T(1,128)}', space=vmem, size = 0x12000, scoped, tag = 'internal scratch']
  %s0 = inlined_call_operand.hbm [shape: f32[2,8], index: 0, kind: input, shape index: {}]
  %s1 = inlined_call_operand.hbm [shape: f32[2,32], index: 1, kind: input, shape index: {}]
  %s2 = inlined_call_operand.vmem [shape: f32[2,8,32], index: 2, kind: input, shape index: {}]
  %s3 = inlined_call_operand.vmem [shape: f32[32,32], index: 3, kind: input, shape index: {}]
  %s4 = inlined_call_operand.vmem [shape: f32[32,32], index: 4, kind: input, shape index: {}]
  %s5 = inlined_call_operand.vmem [shape: f32[1,32], index: 5, kind: input, shape index: {}]
  %s6 = inlined_call_operand.vmem [shape: f32[40,96], index: 6, kind: input, shape index: {}]
  %s7 = inlined_call_operand.vmem [shape: f32[1,96], index: 7, kind: input, shape index: {}]
  %s8 = inlined_call_operand.hbm [shape: f32[32,96], index: 8, kind: input, shape index: {}]
  %s9 = inlined_call_operand.vmem [shape: f32[1,96], index: 9, kind: input, shape index: {}]
  %s10 = inlined_call_operand.vmem [shape: f32[72,8], index: 10, kind: input, shape index: {}]
  %s11 = inlined_call_operand.vmem [shape: f32[1,8], index: 11, kind: input, shape index: {}]
  %s12 = inlined_call_operand.vmem [shape: f32[2,40], index: 12, kind: output, shape index: {}]
  %s13 = sld [smem:[#allocation0]]
  $region70: #{decoder_forward.1} parent=0
    _
  %s15 = ssub.s32 1, %s13
  %s16 = scalar_select 0, %s15, %s13
  $region1: #{decoder_forward.1} parent=0
    #allocation2 [shape = 'u8[1024]{0}', space=vmem, size = 0x400, scoped, tag = 'input window, operand 0, single buffered']
    #allocation3 [shape = 's32[1]{0}', space=sflag, size = 0x4, scoped, tag = 'scoped memory for decoder_forward.1']
    #allocation4 [shape = 'u8[1024]{0}', space=vmem, size = 0x400, scoped, tag = 'input window, operand 1, single buffered']
    #allocation5 [shape = 's32[1]{0}', space=sflag, size = 0x4, scoped, tag = 'scoped memory for decoder_forward.1']
    #allocation6 [shape = 'u8[16384]{0}', space=vmem, size = 0x4000, scoped, tag = 'input window, operand 8, single buffered']
    %17 = vsyncpa [#allocation3], 0
    %18 = vsyncpa [#allocation5], 0
    // Predicated region
    $region2: #{decoder_forward.1} parent=1 // pred_check
      _
    $region3: #{decoder_forward.1} parent=1 // pred_check_branch
      %20 = sbr.rel (0) target = $region5
    $region4: #{decoder_forward.1} parent=1 // pred_region
      %s22 = ssub.s32 32, 32
      %23 = vsyncadd [#allocation3], %s22
      %s25 = sshll.u32 [#allocation2], 4
      %s26 = int_to_ptr.vmem [resolvable:$true] %s25
      %28 = dma.hbm_to_vmem [thread:$0]  %s0, 32, %s26, [#allocation3]
    $region5: #{decoder_forward.1} parent=1 // pred_fallthru
      _
    // Predicated region
    $region6: #{decoder_forward.1} parent=1 // pred_check
      _
    $region7: #{decoder_forward.1} parent=1 // pred_check_branch
      %30 = sbr.rel (0) target = $region9
    $region8: #{decoder_forward.1} parent=1 // pred_region
      %s32 = ssub.s32 32, 32
      %33 = vsyncadd [#allocation5], %s32
      %s35 = sshll.u32 [#allocation4], 4
      %s36 = int_to_ptr.vmem [resolvable:$true] %s35
      %38 = dma.hbm_to_vmem [thread:$0]  %s1, 32, %s36, [#allocation5]
    $region9: #{decoder_forward.1} parent=1 // pred_fallthru
      _
    // Predicated region
    $region10: #{decoder_forward.1} parent=1 // pred_check
      _
    $region11: #{decoder_forward.1} parent=1 // pred_check_branch
      %40 = sbr.rel (0) target = $region13
    $region12: #{decoder_forward.1} parent=1 // pred_region
      _
    $region13: #{decoder_forward.1} parent=1 // pred_fallthru
      _
    // Predicated region
    $region14: #{decoder_forward.1} parent=1 // pred_check
      _
    $region15: #{decoder_forward.1} parent=1 // pred_check_branch
      %42 = sbr.rel (0) target = $region17
    $region16: #{decoder_forward.1} parent=1 // pred_region
      _
    $region17: #{decoder_forward.1} parent=1 // pred_fallthru
      _
    // Predicated region
    $region18: #{decoder_forward.1} parent=1 // pred_check
      _
    $region19: #{decoder_forward.1} parent=1 // pred_check_branch
      %44 = sbr.rel (0) target = $region21
    $region20: #{decoder_forward.1} parent=1 // pred_region
      _
    $region21: #{decoder_forward.1} parent=1 // pred_fallthru
      _
    // Predicated region
    $region22: #{decoder_forward.1} parent=1 // pred_check
      _
    $region23: #{decoder_forward.1} parent=1 // pred_check_branch
      %46 = sbr.rel (0) target = $region25
    $region24: #{decoder_forward.1} parent=1 // pred_region
      _
    $region25: #{decoder_forward.1} parent=1 // pred_fallthru
      _
    // Predicated region
    $region26: #{decoder_forward.1} parent=1 // pred_check
      _
    $region27: #{decoder_forward.1} parent=1 // pred_check_branch
      %48 = sbr.rel (0) target = $region29
    $region28: #{decoder_forward.1} parent=1 // pred_region
      _
    $region29: #{decoder_forward.1} parent=1 // pred_fallthru
      _
    // Predicated region
    $region30: #{decoder_forward.1} parent=1 // pred_check
      _
    $region31: #{decoder_forward.1} parent=1 // pred_check_branch
      %50 = sbr.rel (0) target = $region33
    $region32: #{decoder_forward.1} parent=1 // pred_region
      _
    $region33: #{decoder_forward.1} parent=1 // pred_fallthru
      _
    // Predicated region
    $region34: #{decoder_forward.1} parent=1 // pred_check
      _
    $region35: #{decoder_forward.1} parent=1 // pred_check_branch
      %52 = sbr.rel (0) target = $region37
    $region36: #{decoder_forward.1} parent=1 // pred_region
      %s54 = ssub.s32 512, 512
      %55 = vsyncadd [#allocation5], %s54
      %s56 = sshll.u32 [#allocation6], 4
      %s57 = int_to_ptr.vmem [resolvable:$true] %s56
      %62 = dma.hbm_to_vmem [thread:$0]  %s8, 512, %s57, [#allocation5], 128, 128, 8
    $region37: #{decoder_forward.1} parent=1 // pred_fallthru
      _
    // Predicated region
    $region38: #{decoder_forward.1} parent=1 // pred_check
      _
    $region39: #{decoder_forward.1} parent=1 // pred_check_branch
      %64 = sbr.rel (0) target = $region41
    $region40: #{decoder_forward.1} parent=1 // pred_region
      _
    $region41: #{decoder_forward.1} parent=1 // pred_fallthru
      _
    // Predicated region
    $region42: #{decoder_forward.1} parent=1 // pred_check
      _
    $region43: #{decoder_forward.1} parent=1 // pred_check_branch
      %66 = sbr.rel (0) target = $region45
    $region44: #{decoder_forward.1} parent=1 // pred_region
      _
    $region45: #{decoder_forward.1} parent=1 // pred_fallthru
      _
    // Predicated region
    $region46: #{decoder_forward.1} parent=1 // pred_check
      _
    $region47: #{decoder_forward.1} parent=1 // pred_check_branch
      %68 = sbr.rel (0) target = $region49
    $region48: #{decoder_forward.1} parent=1 // pred_region
      _
    $region49: #{decoder_forward.1} parent=1 // pred_fallthru
      _
    // Predicated region
    $region50: #{decoder_forward.1} parent=1 // pred_check
      _
    $region51: #{decoder_forward.1} parent=1 // pred_check_branch
      %70 = sbr.rel (0) target = $region53
    $region52: #{decoder_forward.1} parent=1 // pred_region
      %71 = dma.done [#allocation3], 32
    $region53: #{decoder_forward.1} parent=1 // pred_fallthru
      _
    // Predicated region
    $region54: #{decoder_forward.1} parent=1 // pred_check
      _
    $region55: #{decoder_forward.1} parent=1 // pred_check_branch
      %73 = sbr.rel (0) target = $region57
    $region56: #{decoder_forward.1} parent=1 // pred_region
      %74 = dma.done [#allocation5], 32
    $region57: #{decoder_forward.1} parent=1 // pred_fallthru
      _
    // Predicated region
    $region58: #{decoder_forward.1} parent=1 // pred_check
      _
    $region59: #{decoder_forward.1} parent=1 // pred_check_branch
      %76 = sbr.rel (0) target = $region61
    $region60: #{decoder_forward.1} parent=1 // pred_region
      %77 = dma.done [#allocation5], 512
    $region61: #{decoder_forward.1} parent=1 // pred_fallthru
      _
    %v78 = vld [vmem:[#allocation2] sm:$0x3]
    %v79 = vld [vmem:[#allocation4] sm:$0x3]
    %v80 = vld [vmem:[%s2] sm:$0xff]
    %v81 = vld [vmem:[%s2 + $0x8] sm:$0xff]
    %v82 = vld [vmem:[%s3] sm:$0xff]
    %v83 = vld [vmem:[%s3 + $0x8] sm:$0xff]
    %v84 = vld [vmem:[%s3 + $0x10] sm:$0xff]
    %v85 = vld [vmem:[%s3 + $0x18] sm:$0xff]
    %vm86 = vcmask 261120
    %v88 = vsel %vm86, %v79, 0
    %90 = vmatprep.subr.mxu0 0.0
    %91 = vmatpush1.msra.mxu0 0.0
    %92 = vmatprep.subr.mxu0 0.0
    %93 = vmatpush1.msra.mxu0 0.0
    %94 = vmatprep.subr.mxu0 0.0
    %95 = vmatpush1.msra.mxu0 0.0
    %96 = vmatprep.subr.mxu0 0.0
    %97 = vmatpush1.msra.mxu0 0.0
    %98 = vmatprep.subr.mxu0 0.0
    %99 = vmatpush1.msra.mxu0 0.0
    %100 = vmatprep.subr.mxu0 0.0
    %101 = vmatpush1.msra.mxu0 0.0
    %102 = vmatprep.subr.mxu0 0.0
    %103 = vmatpush1.msra.mxu0 0.0
    %104 = vmatprep.subr.mxu0 0.0
    %105 = vmatpush1.msra.mxu0 0.0
    %106 = vmatprep.subr.mxu0 0.0
    %107 = vmatpush1.msra.mxu0 0.0
    %108 = vmatprep.subr.mxu0 0.0
    %109 = vmatpush1.msra.mxu0 0.0
    %110 = vmatprep.subr.mxu0 0.0
    %111 = vmatpush1.msra.mxu0 0.0
    %112 = vmatprep.subr.mxu0 0.0
    %113 = vmatpush1.msra.mxu0 0.0
    %114 = vmatprep.subr.mxu0 0.0
    %115 = vmatpush1.msra.mxu0 %v85
    %116 = vmatprep.subr.mxu0 0.0
    %117 = vmatpush1.msra.mxu0 %v84
    %118 = vmatprep.subr.mxu0 0.0
    %119 = vmatpush1.msra.mxu0 %v83
    %120 = vmatprep.subr.mxu0 0.0
    %121 = vmatpush1.msra.mxu0 %v82
    %122 = vmatprep.subr.mxu0 0.0
    %123 = vmatpush2.msra.mxu0 0.0
    %124 = vmatprep.subr.mxu0 0.0
    %125 = vmatpush2.msra.mxu0 0.0
    %126 = vmatprep.subr.mxu0 0.0
    %127 = vmatpush2.msra.mxu0 0.0
    %128 = vmatprep.subr.mxu0 0.0
    %129 = vmatpush2.msra.mxu0 0.0
    %130 = vmatprep.subr.mxu0 0.0
    %131 = vmatpush2.msra.mxu0 0.0
    %132 = vmatprep.subr.mxu0 0.0
    %133 = vmatpush2.msra.mxu0 0.0
    %134 = vmatprep.subr.mxu0 0.0
    %135 = vmatpush2.msra.mxu0 0.0
    %136 = vmatprep.subr.mxu0 0.0
    %137 = vmatpush2.msra.mxu0 0.0
    %138 = vmatprep.subr.mxu0 0.0
    %139 = vmatpush2.msra.mxu0 0.0
    %140 = vmatprep.subr.mxu0 0.0
    %141 = vmatpush2.msra.mxu0 0.0
    %142 = vmatprep.subr.mxu0 0.0
    %143 = vmatpush2.msra.mxu0 0.0
    %144 = vmatprep.subr.mxu0 0.0
    %145 = vmatpush2.msra.mxu0 0.0
    %146 = vmatprep.subr.mxu0 0.0
    %147 = vmatpush2.msra.mxu0 0.0
    %148 = vmatprep.subr.mxu0 0.0
    %149 = vmatpush2.msra.mxu0 0.0
    %150 = vmatprep.subr.mxu0 0.0
    %151 = vmatpush2.msra.mxu0 0.0
    %152 = vmatprep.subr.mxu0 0.0
    %153 = vmatpush2.msra.mxu0 0.0
    %154 = vmatprep.mubr.f32.mxu0 0.0
    %155 = vmatmul.mubr.f32.gmra.mxu0 %v88
    %v156 = vpop.f32.mrf.mxu0
    %v157 = vadd.f32 0.0, %v156
    %v158 = vpop.f32.mrf.mxu0
    %159 = vdwg.mxu0
    %v160 = vld [vmem:[%s4] sm:$0xff]
    %v161 = vld [vmem:[%s4 + $0x8] sm:$0xff]
    %v162 = vld [vmem:[%s4 + $0x10] sm:$0xff]
    %v163 = vld [vmem:[%s4 + $0x18] sm:$0xff]
    %v165 = vsel %vm86, %v80, 0
    %v168 = vsel %vm86, %v81, 0
    %170 = vmatprep.subr.mxu0 0.0
    %171 = vmatpush1.msra.mxu0 0.0
    %172 = vmatprep.subr.mxu0 0.0
    %173 = vmatpush1.msra.mxu0 0.0
    %174 = vmatprep.subr.mxu0 0.0
    %175 = vmatpush1.msra.mxu0 0.0
    %176 = vmatprep.subr.mxu0 0.0
    %177 = vmatpush1.msra.mxu0 0.0
    %178 = vmatprep.subr.mxu0 0.0
    %179 = vmatpush1.msra.mxu0 0.0
    %180 = vmatprep.subr.mxu0 0.0
    %181 = vmatpush1.msra.mxu0 0.0
    %182 = vmatprep.subr.mxu0 0.0
    %183 = vmatpush1.msra.mxu0 0.0
    %184 = vmatprep.subr.mxu0 0.0
    %185 = vmatpush1.msra.mxu0 0.0
    %186 = vmatprep.subr.mxu0 0.0
    %187 = vmatpush1.msra.mxu0 0.0
    %188 = vmatprep.subr.mxu0 0.0
    %189 = vmatpush1.msra.mxu0 0.0
    %190 = vmatprep.subr.mxu0 0.0
    %191 = vmatpush1.msra.mxu0 0.0
    %192 = vmatprep.subr.mxu0 0.0
    %193 = vmatpush1.msra.mxu0 0.0
    %194 = vmatprep.subr.mxu0 0.0
    %195 = vmatpush1.msra.mxu0 %v163
    %196 = vmatprep.subr.mxu0 0.0
    %197 = vmatpush1.msra.mxu0 %v162
    %198 = vmatprep.subr.mxu0 0.0
    %199 = vmatpush1.msra.mxu0 %v161
    %200 = vmatprep.subr.mxu0 0.0
    %201 = vmatpush1.msra.mxu0 %v160
    %202 = vmatprep.subr.mxu0 0.0
    %203 = vmatpush2.msra.mxu0 0.0
    %204 = vmatprep.subr.mxu0 0.0
    %205 = vmatpush2.msra.mxu0 0.0
    %206 = vmatprep.subr.mxu0 0.0
    %207 = vmatpush2.msra.mxu0 0.0
    %208 = vmatprep.subr.mxu0 0.0
    %209 = vmatpush2.msra.mxu0 0.0
    %210 = vmatprep.subr.mxu0 0.0
    %211 = vmatpush2.msra.mxu0 0.0
    %212 = vmatprep.subr.mxu0 0.0
    %213 = vmatpush2.msra.mxu0 0.0
    %214 = vmatprep.subr.mxu0 0.0
    %215 = vmatpush2.msra.mxu0 0.0
    %216 = vmatprep.subr.mxu0 0.0
    %217 = vmatpush2.msra.mxu0 0.0
    %218 = vmatprep.subr.mxu0 0.0
    %219 = vmatpush2.msra.mxu0 0.0
    %220 = vmatprep.subr.mxu0 0.0
    %221 = vmatpush2.msra.mxu0 0.0
    %222 = vmatprep.subr.mxu0 0.0
    %223 = vmatpush2.msra.mxu0 0.0
    %224 = vmatprep.subr.mxu0 0.0
    %225 = vmatpush2.msra.mxu0 0.0
    %226 = vmatprep.subr.mxu0 0.0
    %227 = vmatpush2.msra.mxu0 0.0
    %228 = vmatprep.subr.mxu0 0.0
    %229 = vmatpush2.msra.mxu0 0.0
    %230 = vmatprep.subr.mxu0 0.0
    %231 = vmatpush2.msra.mxu0 0.0
    %232 = vmatprep.subr.mxu0 0.0
    %233 = vmatpush2.msra.mxu0 0.0
    %234 = vmatprep.mubr.f32.mxu0 0.0
    %235 = vmatmul.mubr.f32.gmra.mxu0 %v165
    %v236 = vpop.f32.mrf.mxu0
    %v237 = vadd.f32 0.0, %v236
    %v238 = vpop.f32.mrf.mxu0
    %239 = vmatprep.mubr.f32.mxu0 0.0
    %240 = vmatmul.mubr.f32.gmra.mxu0 %v168
    %v241 = vpop.f32.mrf.mxu0
    %v242 = vadd.f32 0.0, %v241
    %v243 = vpop.f32.mrf.mxu0
    %244 = vdwg.mxu0
    %v247 = vunpack.c.l.s4 1966171168
    %v248 = vunpack.c.0.s8 %v247
    %v249 = vlaneseq
    %v250 = vshrl.u32 %v249, 7
    %v251 = vsub.s32 %v248, %v250
    %v252 = vrot.slane %v157, %v251
    %v253 = vcombine.high %v252, %v252
    %v255 = vunpack.c.l.s4 1966171168
    %v256 = vunpack.c.0.s8 %v255
    %v257 = vlaneseq
    %v258 = vshrl.u32 %v257, 7
    %v259 = vsub.s32 %v256, %v258
    %v260 = vrot.slane %v252, %v259
    %v262 = vunpack.c.l.s4 1966171168
    %v263 = vunpack.c.0.s8 %v262
    %v264 = vlaneseq
    %v265 = vshrl.u32 %v264, 7
    %v266 = vsub.s32 %v263, %v265
    %v267 = vrot.slane %v253, %v266
    %v268 = vlaneseq
    %v269 = vshrl.u32 %v268, 7
    %v270 = vsub.s32 0, %v269
    %v271 = vrot.slane %v260, %v270
    %v272 = vlaneseq
    %v273 = vshrl.u32 %v272, 7
    %v274 = vsub.s32 0, %v273
    %v275 = vrot.slane %v267, %v274
    %v278 = vadd.f32 %v237, %v271
    %v279 = vadd.f32 %v242, %v275
    %v280 = vtanh.pop %v278
    %v281 = vtanh.pop %v279
    %v282 = vld [vmem:[%s5] sm:$0x1]
    %v284 = vlaneseq
    %v285 = vshrl.u32 %v284, 7
    %v286 = vsub.s32 0, %v285
    %v287 = vrot.slane %v282, %v286
    %v289 = vmul.f32 %v280, %v287
    %v290 = vmul.f32 %v281, %v287
    %v291 = vsel %vm86, %v289, 0.0
    %292 = vadd.xlane.f32.xlu0 %v291
    %v293 = vpop.xlane.xlu0 %292
    %v294 = vsel %vm86, %v290, 0.0
    %295 = vadd.xlane.f32.xlu0 %v294
    %v296 = vpop.xlane.xlu0 %295
    %v299 = vlaneseq
    %v300 = vand.u32 %v299, 127
    %v301 = vlaneseq
    %v302 = vshrl.u32 %v301, 7
    %v303 = vsub.s32 %v300, %v302
    %v304 = vrot.slane %v293, %v303
    %v305 = vlaneseq
    %v306 = vshrl.u32 %v305, 7
    %v307 = vsub.s32 %v300, %v306
    %v308 = vrot.slane %v296, %v307
    %vm309 = vcmask 1041409
    %v310 = vsel %vm309, %v308, %v304
    %vm312 = vcmask 58368
    %v313 = vsel %vm312, %v310, -inf
    %314 = vmax.xlane.f32.xlu0 %v313
    %v315 = vpop.xlane.xlu0 %314
    %v317 = vlaneseq
    %v318 = vshrl.u32 %v317, 7
    %v319 = vsub.s32 0, %v318
    %v320 = vrot.slane %v315, %v319
    %v321 = vlaneseq
    %v322 = vshrl.u32 %v321, 7
    %v323 = vsub.s32 1, %v322
    %v324 = vrot.slane %v315, %v323
    %v327 = vsub.f32 %v293, %v320
    %v328 = vsub.f32 %v296, %v324
    %v329 = vmul.f32 %v327, 1.442695
    %v330 = vpow.pop %v329
    %v331 = vmul.f32 %v328, 1.442695
    %v332 = vpow.pop %v331
    %335 = vset.pattern.permute.xlu0 0
    %336 = vperm.xlu0 %335, %v330
    %v337 = vpop.permute.xlu0 %336
    %338 = vset.pattern.permute.xlu0 0
    %339 = vperm.xlu0 %338, %v332
    %v340 = vpop.permute.xlu0 %339
    %v341 = vlaneseq
    %v342 = vshrl.u32 %v341, 7
    %v343 = vsub.s32 %v300, %v342
    %v344 = vrot.slane %v337, %v343
    %v345 = vlaneseq
    %v346 = vshrl.u32 %v345, 7
    %v347 = vsub.s32 %v300, %v346
    %v348 = vrot.slane %v340, %v347
    %v349 = vsel %vm309, %v348, %v344
    %v351 = vsel %vm312, %v349, 0.0
    %352 = vadd.xlane.f32.xlu0 %v351
    %v353 = vpop.xlane.xlu0 %352
    %v355 = vlaneseq
    %v356 = vshrl.u32 %v355, 7
    %v357 = vsub.s32 0, %v356
    %v358 = vrot.slane %v353, %v357
    %v359 = vlaneseq
    %v360 = vshrl.u32 %v359, 7
    %v361 = vsub.s32 1, %v360
    %v362 = vrot.slane %v353, %v361
    %v365 = vrcp.pop %v358
    %v366 = vmul.f32 %v330, %v365
    %v367 = vrcp.pop %v362
    %v368 = vmul.f32 %v332, %v367
    %370 = vset.pattern.permute.xlu0 0
    %371 = vperm.xlu0 %370, %v366
    %v372 = vpop.permute.xlu0 %371
    %375 = vset.pattern.permute.xlu0 0
    %376 = vperm.xlu0 %375, %v368
    %v377 = vpop.permute.xlu0 %376
    %v379 = vmul.f32 %v372, %v80
    %v380 = vmul.f32 %v377, %v81
    %v381 = vsel %vm86, %v379, 0.0
    %v382 = vrot.slane %v381, 4
    %v383 = vadd.f32 %v381, %v382
    %v384 = vrot.slane %v383, 2
    %v385 = vadd.f32 %v383, %v384
    %v386 = vrot.slane %v385, 1
    %v387 = vadd.f32 %v385, %v386
    %v388 = vsel %vm86, %v380, 0.0
    %v389 = vrot.slane %v388, 4
    %v390 = vadd.f32 %v388, %v389
    %v391 = vrot.slane %v390, 2
    %v392 = vadd.f32 %v390, %v391
    %v393 = vrot.slane %v392, 1
    %v394 = vadd.f32 %v392, %v393
    %v397 = vsel %vm309, %v394, %v387
    %398 = vrot.lane.b32.xlu0 %v397, 8
    %v399 = vpop.permute.xlu0 %398
    %vm401 = vcmask 64512
    %v402 = vsel %vm401, %v78, %v399
    %v403 = vld [vmem:[%s6] sm:$0xff]
    %v404 = vld [vmem:[%s6 + $0x8] sm:$0xff]
    %v405 = vld [vmem:[%s6 + $0x10] sm:$0xff]
    %v406 = vld [vmem:[%s6 + $0x18] sm:$0xff]
    %v407 = vld [vmem:[%s6 + $0x20] sm:$0xff]
    %v408 = vld [vmem:[%s7] sm:$0x1]
    %v410 = vlaneseq
    %v411 = vshrl.u32 %v410, 7
    %v412 = vsub.s32 0, %v411
    %v413 = vrot.slane %v408, %v412
    %vm415 = vcmask 326656
    %v417 = vsel %vm415, %v402, 0
    %419 = vmatprep.subr.mxu0 0.0
    %420 = vmatpush1.msra.mxu0 0.0
    %421 = vmatprep.subr.mxu0 0.0
    %422 = vmatpush1.msra.mxu0 0.0
    %423 = vmatprep.subr.mxu0 0.0
    %424 = vmatpush1.msra.mxu0 0.0
    %425 = vmatprep.subr.mxu0 0.0
    %426 = vmatpush1.msra.mxu0 0.0
    %427 = vmatprep.subr.mxu0 0.0
    %428 = vmatpush1.msra.mxu0 0.0
    %429 = vmatprep.subr.mxu0 0.0
    %430 = vmatpush1.msra.mxu0 0.0
    %431 = vmatprep.subr.mxu0 0.0
    %432 = vmatpush1.msra.mxu0 0.0
    %433 = vmatprep.subr.mxu0 0.0
    %434 = vmatpush1.msra.mxu0 0.0
    %435 = vmatprep.subr.mxu0 0.0
    %436 = vmatpush1.msra.mxu0 0.0
    %437 = vmatprep.subr.mxu0 0.0
    %438 = vmatpush1.msra.mxu0 0.0
    %439 = vmatprep.subr.mxu0 0.0
    %440 = vmatpush1.msra.mxu0 0.0
    %441 = vmatprep.subr.mxu0 0.0
    %442 = vmatpush1.msra.mxu0 %v407
    %443 = vmatprep.subr.mxu0 0.0
    %444 = vmatpush1.msra.mxu0 %v406
    %445 = vmatprep.subr.mxu0 0.0
    %446 = vmatpush1.msra.mxu0 %v405
    %447 = vmatprep.subr.mxu0 0.0
    %448 = vmatpush1.msra.mxu0 %v404
    %449 = vmatprep.subr.mxu0 0.0
    %450 = vmatpush1.msra.mxu0 %v403
    %451 = vmatprep.subr.mxu0 0.0
    %452 = vmatpush2.msra.mxu0 0.0
    %453 = vmatprep.subr.mxu0 0.0
    %454 = vmatpush2.msra.mxu0 0.0
    %455 = vmatprep.subr.mxu0 0.0
    %456 = vmatpush2.msra.mxu0 0.0
    %457 = vmatprep.subr.mxu0 0.0
    %458 = vmatpush2.msra.mxu0 0.0
    %459 = vmatprep.subr.mxu0 0.0
    %460 = vmatpush2.msra.mxu0 0.0
    %461 = vmatprep.subr.mxu0 0.0
    %462 = vmatpush2.msra.mxu0 0.0
    %463 = vmatprep.subr.mxu0 0.0
    %464 = vmatpush2.msra.mxu0 0.0
    %465 = vmatprep.subr.mxu0 0.0
    %466 = vmatpush2.msra.mxu0 0.0
    %467 = vmatprep.subr.mxu0 0.0
    %468 = vmatpush2.msra.mxu0 0.0
    %469 = vmatprep.subr.mxu0 0.0
    %470 = vmatpush2.msra.mxu0 0.0
    %471 = vmatprep.subr.mxu0 0.0
    %472 = vmatpush2.msra.mxu0 0.0
    %473 = vmatprep.subr.mxu0 0.0
    %474 = vmatpush2.msra.mxu0 0.0
    %475 = vmatprep.subr.mxu0 0.0
    %476 = vmatpush2.msra.mxu0 0.0
    %477 = vmatprep.subr.mxu0 0.0
    %478 = vmatpush2.msra.mxu0 0.0
    %479 = vmatprep.subr.mxu0 0.0
    %480 = vmatpush2.msra.mxu0 0.0
    %481 = vmatprep.subr.mxu0 0.0
    %482 = vmatpush2.msra.mxu0 0.0
    %483 = vmatprep.mubr.f32.mxu0 0.0
    %484 = vmatmul.mubr.f32.gmra.mxu0 %v417
    %v485 = vpop.f32.mrf.mxu0
    %v486 = vadd.f32 %v413, %v485
    %v487 = vpop.f32.mrf.mxu0
    %488 = vdwg.mxu0
    %v489 = vld [vmem:[#allocation6] sm:$0xff]
    %v490 = vld [vmem:[#allocation6 + $0x8] sm:$0xff]
    %v491 = vld [vmem:[#allocation6 + $0x10] sm:$0xff]
    %v492 = vld [vmem:[#allocation6 + $0x18] sm:$0xff]
    %v493 = vld [vmem:[%s9] sm:$0x1]
    %v495 = vlaneseq
    %v496 = vshrl.u32 %v495, 7
    %v497 = vsub.s32 0, %v496
    %v498 = vrot.slane %v493, %v497
    %500 = vmatprep.subr.mxu0 0.0
    %501 = vmatpush1.msra.mxu0 0.0
    %502 = vmatprep.subr.mxu0 0.0
    %503 = vmatpush1.msra.mxu0 0.0
    %504 = vmatprep.subr.mxu0 0.0
    %505 = vmatpush1.msra.mxu0 0.0
    %506 = vmatprep.subr.mxu0 0.0
    %507 = vmatpush1.msra.mxu0 0.0
    %508 = vmatprep.subr.mxu0 0.0
    %509 = vmatpush1.msra.mxu0 0.0
    %510 = vmatprep.subr.mxu0 0.0
    %511 = vmatpush1.msra.mxu0 0.0
    %512 = vmatprep.subr.mxu0 0.0
    %513 = vmatpush1.msra.mxu0 0.0
    %514 = vmatprep.subr.mxu0 0.0
    %515 = vmatpush1.msra.mxu0 0.0
    %516 = vmatprep.subr.mxu0 0.0
    %517 = vmatpush1.msra.mxu0 0.0
    %518 = vmatprep.subr.mxu0 0.0
    %519 = vmatpush1.msra.mxu0 0.0
    %520 = vmatprep.subr.mxu0 0.0
    %521 = vmatpush1.msra.mxu0 0.0
    %522 = vmatprep.subr.mxu0 0.0
    %523 = vmatpush1.msra.mxu0 0.0
    %524 = vmatprep.subr.mxu0 0.0
    %525 = vmatpush1.msra.mxu0 %v492
    %526 = vmatprep.subr.mxu0 0.0
    %527 = vmatpush1.msra.mxu0 %v491
    %528 = vmatprep.subr.mxu0 0.0
    %529 = vmatpush1.msra.mxu0 %v490
    %530 = vmatprep.subr.mxu0 0.0
    %531 = vmatpush1.msra.mxu0 %v489
    %532 = vmatprep.subr.mxu0 0.0
    %533 = vmatpush2.msra.mxu0 0.0
    %534 = vmatprep.subr.mxu0 0.0
    %535 = vmatpush2.msra.mxu0 0.0
    %536 = vmatprep.subr.mxu0 0.0
    %537 = vmatpush2.msra.mxu0 0.0
    %538 = vmatprep.subr.mxu0 0.0
    %539 = vmatpush2.msra.mxu0 0.0
    %540 = vmatprep.subr.mxu0 0.0
    %541 = vmatpush2.msra.mxu0 0.0
    %542 = vmatprep.subr.mxu0 0.0
    %543 = vmatpush2.msra.mxu0 0.0
    %544 = vmatprep.subr.mxu0 0.0
    %545 = vmatpush2.msra.mxu0 0.0
    %546 = vmatprep.subr.mxu0 0.0
    %547 = vmatpush2.msra.mxu0 0.0
    %548 = vmatprep.subr.mxu0 0.0
    %549 = vmatpush2.msra.mxu0 0.0
    %550 = vmatprep.subr.mxu0 0.0
    %551 = vmatpush2.msra.mxu0 0.0
    %552 = vmatprep.subr.mxu0 0.0
    %553 = vmatpush2.msra.mxu0 0.0
    %554 = vmatprep.subr.mxu0 0.0
    %555 = vmatpush2.msra.mxu0 0.0
    %556 = vmatprep.subr.mxu0 0.0
    %557 = vmatpush2.msra.mxu0 0.0
    %558 = vmatprep.subr.mxu0 0.0
    %559 = vmatpush2.msra.mxu0 0.0
    %560 = vmatprep.subr.mxu0 0.0
    %561 = vmatpush2.msra.mxu0 0.0
    %562 = vmatprep.subr.mxu0 0.0
    %563 = vmatpush2.msra.mxu0 0.0
    %564 = vmatprep.mubr.f32.mxu0 0.0
    %565 = vmatmul.mubr.f32.gmra.mxu0 %v88
    %v566 = vpop.f32.mrf.mxu0
    %v567 = vadd.f32 %v498, %v566
    %v568 = vpop.f32.mrf.mxu0
    %569 = vdwg.mxu0
    %v570 = vadd.f32 %v486, %v567
    %v571 = vxor.u32 %v570, 2147483648
    %v572 = vmul.f32 %v571, 1.442695
    %v573 = vpow.pop %v572
    %v574 = vadd.f32 %v573, 1.0
    %v575 = vrcp.pop %v574
    %v576 = vmul.f32 1.0, %v575
    %578 = vrot.lane.b32.xlu0 %v567, 64
    %v579 = vpop.permute.xlu0 %578
    %v581 = vmul.f32 %v576, %v579
    %583 = vrot.lane.b32.xlu0 %v581, 64
    %v584 = vpop.permute.xlu0 %583
    %v586 = vadd.f32 %v486, %v584
    %v587 = vtanh.pop %v586
    %v588 = vsub.f32 1.0, %v576
    %590 = vrot.lane.b32.xlu0 %v587, 96
    %v591 = vpop.permute.xlu0 %590
    %v593 = vmul.f32 %v588, %v591
    %594 = vrot.lane.b32.xlu0 %v79, 32
    %v595 = vpop.permute.xlu0 %594
    %v597 = vmul.f32 %v576, %v595
    %v598 = vadd.f32 %v593, %v597
    %600 = vrot.lane.b32.xlu0 %v598, 96
    %v601 = vpop.permute.xlu0 %600
    %603 = vrot.lane.b32.xlu0 %v397, 32
    %v604 = vpop.permute.xlu0 %603
    %607 = vrot.lane.b32.xlu0 %v78, 64
    %v608 = vpop.permute.xlu0 %607
    %v610 = vsel %vm86, %v601, %v604
    %vm611 = vcmask 523264
    %v612 = vsel %vm611, %v610, %v608
    %v613 = vld [vmem:[%s10] sm:$0xff]
    %v614 = vld [vmem:[%s10 + $0x8] sm:$0xff]
    %v615 = vld [vmem:[%s10 + $0x10] sm:$0xff]
    %v616 = vld [vmem:[%s10 + $0x18] sm:$0xff]
    %v617 = vld [vmem:[%s10 + $0x20] sm:$0xff]
    %v618 = vld [vmem:[%s10 + $0x28] sm:$0xff]
    %v619 = vld [vmem:[%s10 + $0x30] sm:$0xff]
    %v620 = vld [vmem:[%s10 + $0x38] sm:$0xff]
    %v621 = vld [vmem:[%s10 + $0x40] sm:$0xff]
    %v622 = vld [vmem:[%s11] sm:$0x1]
    %v624 = vlaneseq
    %v625 = vshrl.u32 %v624, 7
    %v626 = vsub.s32 0, %v625
    %v627 = vrot.slane %v622, %v626
    %vm629 = vcmask 588800
    %v631 = vsel %vm629, %v612, 0
    %633 = vmatprep.subr.mxu0 0.0
    %634 = vmatpush1.msra.mxu0 0.0
    %635 = vmatprep.subr.mxu0 0.0
    %636 = vmatpush1.msra.mxu0 0.0
    %637 = vmatprep.subr.mxu0 0.0
    %638 = vmatpush1.msra.mxu0 0.0
    %639 = vmatprep.subr.mxu0 0.0
    %640 = vmatpush1.msra.mxu0 0.0
    %641 = vmatprep.subr.mxu0 0.0
    %642 = vmatpush1.msra.mxu0 0.0
    %643 = vmatprep.subr.mxu0 0.0
    %644 = vmatpush1.msra.mxu0 0.0
    %645 = vmatprep.subr.mxu0 0.0
    %646 = vmatpush1.msra.mxu0 0.0
    %647 = vmatprep.subr.mxu0 0.0
    %648 = vmatpush1.msra.mxu0 %v621
    %649 = vmatprep.subr.mxu0 0.0
    %650 = vmatpush1.msra.mxu0 %v620
    %651 = vmatprep.subr.mxu0 0.0
    %652 = vmatpush1.msra.mxu0 %v619
    %653 = vmatprep.subr.mxu0 0.0
    %654 = vmatpush1.msra.mxu0 %v618
    %655 = vmatprep.subr.mxu0 0.0
    %656 = vmatpush1.msra.mxu0 %v617
    %657 = vmatprep.subr.mxu0 0.0
    %658 = vmatpush1.msra.mxu0 %v616
    %659 = vmatprep.subr.mxu0 0.0
    %660 = vmatpush1.msra.mxu0 %v615
    %661 = vmatprep.subr.mxu0 0.0
    %662 = vmatpush1.msra.mxu0 %v614
    %663 = vmatprep.subr.mxu0 0.0
    %664 = vmatpush1.msra.mxu0 %v613
    %665 = vmatprep.subr.mxu0 0.0
    %666 = vmatpush2.msra.mxu0 0.0
    %667 = vmatprep.subr.mxu0 0.0
    %668 = vmatpush2.msra.mxu0 0.0
    %669 = vmatprep.subr.mxu0 0.0
    %670 = vmatpush2.msra.mxu0 0.0
    %671 = vmatprep.subr.mxu0 0.0
    %672 = vmatpush2.msra.mxu0 0.0
    %673 = vmatprep.subr.mxu0 0.0
    %674 = vmatpush2.msra.mxu0 0.0
    %675 = vmatprep.subr.mxu0 0.0
    %676 = vmatpush2.msra.mxu0 0.0
    %677 = vmatprep.subr.mxu0 0.0
    %678 = vmatpush2.msra.mxu0 0.0
    %679 = vmatprep.subr.mxu0 0.0
    %680 = vmatpush2.msra.mxu0 0.0
    %681 = vmatprep.subr.mxu0 0.0
    %682 = vmatpush2.msra.mxu0 0.0
    %683 = vmatprep.subr.mxu0 0.0
    %684 = vmatpush2.msra.mxu0 0.0
    %685 = vmatprep.subr.mxu0 0.0
    %686 = vmatpush2.msra.mxu0 0.0
    %687 = vmatprep.subr.mxu0 0.0
    %688 = vmatpush2.msra.mxu0 0.0
    %689 = vmatprep.subr.mxu0 0.0
    %690 = vmatpush2.msra.mxu0 0.0
    %691 = vmatprep.subr.mxu0 0.0
    %692 = vmatpush2.msra.mxu0 0.0
    %693 = vmatprep.subr.mxu0 0.0
    %694 = vmatpush2.msra.mxu0 0.0
    %695 = vmatprep.subr.mxu0 0.0
    %696 = vmatpush2.msra.mxu0 0.0
    %697 = vmatprep.mubr.f32.mxu0 0.0
    %698 = vmatmul.mubr.f32.gmra.mxu0 %v631
    %v699 = vpop.f32.mrf.mxu0
    %v700 = vadd.f32 %v627, %v699
    %v701 = vpop.f32.mrf.mxu0
    %702 = vdwg.mxu0
    %v703 = vtanh.pop %v700
    %704 = vrot.lane.b32.xlu0 %v598, 104
    %v705 = vpop.permute.xlu0 %704
    %v707 = vsel %vm401, %v703, %v705
    %vm708 = vcmask 320512
    %709 = vst.msk [vmem:[%s12] sm:$0x3] %vm708, %v707
    // Predicated region
    $region62: #{decoder_forward.1} parent=1 // pred_check
      _
    $region63: #{decoder_forward.1} parent=1 // pred_check_branch
      %711 = sbr.rel (0) target = $region65
    $region64: #{decoder_forward.1} parent=1 // pred_region
      _
    $region65: #{decoder_forward.1} parent=1 // pred_fallthru
      _
    // Predicated region
    $region66: #{decoder_forward.1} parent=1 // pred_check
      _
    $region67: #{decoder_forward.1} parent=1 // pred_check_branch
      %713 = sbr.rel (0) target = $region69
    $region68: #{decoder_forward.1} parent=1 // pred_region
      _
    $region69: #{decoder_forward.1} parent=1 // pred_fallthru
      _
    %714 = vsyncpa [#allocation3], 1
    %715 = vsyncpa [#allocation5], 1

</llo_original>
